<compile_context>
chip_gen: v5e
topology: v5e:2x2
jax: 0.10.0
libtpu: 0.0.40
codegen_flags: <defaults>
</compile_context>

<pallas_src>
from functools import partial

import jax
import jax.numpy as jnp
from jax import lax
from jax.experimental import pallas as pl
from jax.experimental.pallas import tpu as pltpu

# ----------------------------- configuration --------------------------------
V = 32            # num_tokens (vocab size)
H = 32            # hidden dim of the synthetic generator / discriminator
VP = 128          # lane-padded vocab
PAD_ID = 0
MASK_ID = 2
MASK_PROB = 0.15
REPLACE_PROB = 0.85
TEMPERATURE = 1.0
DISC_WEIGHT = 50.0
GEN_WEIGHT = 1.0
NEG_INF = -1e9

# lane indices of the per-tile partial sums
(_MLM_SUM, _MLM_CNT, _BCE_SUM, _NONPAD_CNT, _GEN_COR,
 _MASK_CNT, _DISC_COR_M, _DISC_COR_U, _UNMASK_CNT) = range(9)

# columns of the packed int side-input
(_C_MIDS, _C_INP, _C_LBL, _C_MSK, _C_VLD, _C_URND) = range(6)


def _round_up(x, m):
    return (x + m - 1) // m * m


# ------------------------------- fused kernel --------------------------------
def electric_fused_kernel(pint_ref,                    # (tile_n, 8)  i32 packed
                          gtab_ref,                    # (VP, VP)     bf16  tanh(emb_g)@wg
                          bg_ref,                      # (1, VP)      f32   gen bias (-1e9 pad)
                          tri_ref,                     # (VP, VP)     bf16  upper-tri ones
                          dlut_ref,                    # (1, VP)      f32   disc scalar LUT
                          part_ref,                    # (1, 8, 128)  f32   partial sums
                          dout_ref,                    # (1, 8, tile_n) f32 labels/preds
                          *, chunk):
    f32 = jnp.float32
    tile_n = pint_ref.shape[0]
    num_chunks = tile_n // chunk

    acc = jnp.zeros((1, 128), f32)          # lane-coded partial sums for this tile
    lane = lax.broadcasted_iota(jnp.int32, (1, 128), 1)

    for c in range(num_chunks):             # short, fully static inner loop
        r0 = c * chunk
        ints = pint_ref[r0:r0 + chunk, :]                       # (chunk, 8) i32
        mids = ints[:, _C_MIDS:_C_MIDS + 1]
        inp = ints[:, _C_INP:_C_INP + 1]
        lbl = ints[:, _C_LBL:_C_LBL + 1]
        msk = ints[:, _C_MSK:_C_MSK + 1]
        vld = ints[:, _C_VLD:_C_VLD + 1]
        u = (ints[:, _C_URND:_C_URND + 1].astype(f32) + 0.5) * f32(1.0 / (1 << 23))

        iota_v = lax.broadcasted_iota(jnp.int32, (chunk, VP), 1)

        # ---- generator: token -> vocab logits, ONE onehot @ LUT matmul (MXU)
        onehot_g = (iota_v == mids).astype(jnp.bfloat16)
        logits = jnp.dot(onehot_g, gtab_ref[...],
                         preferred_element_type=f32) + bg_ref[...]   # (chunk, VP)

        # ---- MLM cross entropy (ignore_index = PAD) ------------------------
        row_max = jnp.max(logits, axis=-1, keepdims=True)
        p = jnp.exp(logits - row_max)                                # (chunk, VP)
        sum_p = jnp.sum(p, axis=-1, keepdims=True)
        lse = row_max + jnp.log(sum_p)
        label_logit = jnp.sum(jnp.where(iota_v == lbl, logits, 0.0),
                              axis=-1, keepdims=True)
        lbl_valid = (lbl != PAD_ID).astype(f32)
        mlm_sum = jnp.sum((lse - label_logit) * lbl_valid, axis=(0, 1), keepdims=True)
        mlm_cnt = jnp.sum(lbl_valid, axis=(0, 1), keepdims=True)

        # ---- generator argmax predictions (reuse row_max) -------------------
        gen_pred = jnp.min(jnp.where(logits >= row_max, iota_v, VP),
                           axis=-1, keepdims=True).astype(jnp.int32)

        # ---- categorical sampling via inverse CDF (lane cumsum on the MXU) --
        if TEMPERATURE == 1.0:
            p_s = p
        else:
            p_s = jnp.exp((logits - row_max) * f32(1.0 / TEMPERATURE))
        cum = jnp.dot(p_s.astype(jnp.bfloat16), tri_ref[...],
                      preferred_element_type=f32)                    # (chunk, VP)
        thr = u * cum[:, VP - 1:VP]
        sampled = jnp.min(jnp.where(cum >= thr, iota_v, VP),
                          axis=-1, keepdims=True).astype(jnp.int32)
        sampled = jnp.minimum(sampled, V - 1)

        disc_in = jnp.where(msk != 0, sampled, inp)                  # (chunk, 1)

        # ---- discriminator collapsed to a per-token scalar LUT ---------------
        x = jnp.sum(jnp.where(iota_v == disc_in, dlut_ref[...], 0.0),
                    axis=-1, keepdims=True)                          # (chunk, 1)

        # ---- BCE-with-logits over non-pad tokens + accuracies ----------------
        disc_labels = (inp != disc_in).astype(f32)
        nonpad = (inp != PAD_ID).astype(f32)
        bce = (jnp.maximum(x, 0.0) - x * disc_labels
               + jnp.log(1.0 + jnp.exp(-jnp.abs(x))))
        bce_sum = jnp.sum(bce * nonpad, axis=(0, 1), keepdims=True)
        nonpad_cnt = jnp.sum(nonpad, axis=(0, 1), keepdims=True)

        disc_pred = (x > 0.0).astype(f32)    # == round((sign(x)+1)/2)

        mskf = (msk != 0).astype(f32)
        umskf = ((msk == 0) & (vld != 0)).astype(f32)   # unmasked AND not N-padding
        mask_cnt = jnp.sum(mskf, axis=(0, 1), keepdims=True)
        unmask_cnt = jnp.sum(umskf, axis=(0, 1), keepdims=True)
        gen_cor = jnp.sum((lbl == gen_pred).astype(f32) * mskf,
                          axis=(0, 1), keepdims=True)
        disc_cor = (disc_labels == disc_pred).astype(f32)
        disc_cor_m = jnp.sum(disc_cor * mskf, axis=(0, 1), keepdims=True)
        disc_cor_u = jnp.sum(disc_cor * umskf, axis=(0, 1), keepdims=True)

        # ---- lane-dense store of disc_labels / disc_pred for this chunk ------
        si = lax.broadcasted_iota(jnp.int32, (chunk, chunk), 0)
        li = lax.broadcasted_iota(jnp.int32, (chunk, chunk), 1)
        diag = si == li
        lab_row = jnp.sum(jnp.where(diag, disc_labels, 0.0), axis=0, keepdims=True)
        prd_row = jnp.sum(jnp.where(diag, disc_pred, 0.0), axis=0, keepdims=True)
        sub8 = lax.broadcasted_iota(jnp.int32, (8, chunk), 0)
        pack8 = (jnp.where(sub8 == 0, lab_row, 0.0)
                 + jnp.where(sub8 == 1, prd_row, 0.0))               # (8, chunk)
        dout_ref[0, :, r0:r0 + chunk] = pack8

        # ---- accumulate the 9 partial sums on distinct lanes ------------------
        acc = acc + ((lane == _MLM_SUM).astype(f32) * mlm_sum
                     + (lane == _MLM_CNT).astype(f32) * mlm_cnt
                     + (lane == _BCE_SUM).astype(f32) * bce_sum
                     + (lane == _NONPAD_CNT).astype(f32) * nonpad_cnt
                     + (lane == _GEN_COR).astype(f32) * gen_cor
                     + (lane == _MASK_CNT).astype(f32) * mask_cnt
                     + (lane == _DISC_COR_M).astype(f32) * disc_cor_m
                     + (lane == _DISC_COR_U).astype(f32) * disc_cor_u
                     + (lane == _UNMASK_CNT).astype(f32) * unmask_cnt)

    part_ref[0] = jnp.broadcast_to(acc, (8, 128))


# ------------------------------ params / prep --------------------------------
def init_params(key):
    ks = jax.random.split(key, 7)
    return {
        "emb_g": jax.random.normal(ks[0], (V, H), jnp.float32) * 0.1,
        "wg":    jax.random.normal(ks[1], (H, V), jnp.float32) * 0.1,
        "bg":    jnp.zeros((V,), jnp.float32),
        "emb_d": jax.random.normal(ks[2], (V, H), jnp.float32) * 0.1,
        "w1":    jax.random.normal(ks[3], (H, H), jnp.float32) * 0.1,
        "b1":    jnp.zeros((H,), jnp.float32),
        "w2":    jax.random.normal(ks[4], (H, 1), jnp.float32) * 0.1,
        "b2":    jnp.zeros((1,), jnp.float32),
    }


def _pad2(x, rows, cols, fill=0.0):
    r, c = x.shape
    return jnp.pad(x, ((0, rows - r), (0, cols - c)), constant_values=fill)


def prepare_kernel_params(params):
    """Fold the per-token nets into lookup tables, lane-pad to 128."""
    # generator: logits = onehot @ (tanh(emb_g) @ wg) + bg
    gen_tab = jnp.tanh(params["emb_g"]) @ params["wg"]                 # (V, V)
    gen_table = _pad2(gen_tab, VP, VP).astype(jnp.bfloat16)
    bg = jnp.full((1, VP), NEG_INF, jnp.float32).at[0, :V].set(params["bg"])
    # discriminator scalar LUT: x(v) = sum(gelu(emb_d@w1[v] + b1) * w2) + b2
    hd = params["emb_d"] @ params["w1"] + params["b1"][None, :]        # (V, H)
    hd = 0.5 * hd * (1.0 + jnp.tanh(0.7978845608028654 *
                                    (hd + 0.044715 * hd * hd * hd)))
    dvals = (hd @ params["w2"] + params["b2"])[:, 0]                   # (V,)
    disc_lut = jnp.zeros((1, VP), jnp.float32).at[0, :V].set(dvals)
    # upper-triangular (inclusive) ones: lane cumsum as a single MXU matmul
    tri = (jnp.arange(VP)[:, None] <= jnp.arange(VP)[None, :]).astype(jnp.bfloat16)
    return gen_table, bg, disc_lut, tri


# ------------------------------ forward wrapper -------------------------------
def electric_forward(input_ids, params, key, tile_rows=512, chunk_rows=128):
    B, T = input_ids.shape
    N = B * T

    # ---- masking prep (glue; mirrors the commented-out PyTorch prep) ----
    k_mask, k_repl, k_u = jax.random.split(key, 3)
    no_mask = input_ids == PAD_ID                       # mask_ignore_token_ids ∪ {pad}
    noise = jax.random.uniform(k_mask, (B, T))
    noise = jnp.where(no_mask, -1.0, noise)
    k = max(1, int(MASK_PROB * T))                      # subset-with-prob per row
    thr = jax.lax.top_k(noise, k)[0][:, -1:]
    mask = (noise >= thr) & (~no_mask)
    replace = jax.random.uniform(k_repl, (B, T)) < REPLACE_PROB
    masked_input = jnp.where(mask & replace, MASK_ID, input_ids)
    gen_labels = jnp.where(mask, input_ids, PAD_ID)

    # ---- tiling: chunk (vreg-resident rows), tile (DMA block), >=2 tiles ----
    chunk = max(8, min(chunk_rows, _round_up((N + 1) // 2, 8)))
    tile_n = min(tile_rows, _round_up((N + 1) // 2, chunk))
    tile_n = max(chunk, (tile_n // chunk) * chunk)      # multiple of chunk
    n_pad = _round_up(N, tile_n)
    num_tiles = n_pad // tile_n

    def _col(x, pad_value):
        x = x.reshape(N).astype(jnp.int32)
        return jnp.pad(x, (0, n_pad - N), constant_values=pad_value).reshape(n_pad, 1)

    urand = jax.random.randint(k_u, (n_pad, 1), 0, 1 << 23, dtype=jnp.int32)
    packed = jnp.concatenate(
        [_col(masked_input, PAD_ID),
         _col(input_ids, PAD_ID),
         _col(gen_labels, PAD_ID),
         _col(mask.astype(jnp.int32), 0),
         jnp.pad(jnp.ones((N, 1), jnp.int32), ((0, n_pad - N), (0, 0))),
         urand,
         jnp.zeros((n_pad, 2), jnp.int32)], axis=1)                   # (n_pad, 8)

    gen_table, bg, disc_lut, tri = prepare_kernel_params(params)

    kernel = partial(electric_fused_kernel, chunk=chunk)

    partials, dout = pl.pallas_call(
        kernel,
        grid=(num_tiles,),
        in_specs=[pl.BlockSpec((tile_n, 8), lambda i: (i, 0)),
                  pl.BlockSpec((VP, VP), lambda i: (0, 0)),
                  pl.BlockSpec((1, VP), lambda i: (0, 0)),
                  pl.BlockSpec((VP, VP), lambda i: (0, 0)),
                  pl.BlockSpec((1, VP), lambda i: (0, 0))],
        out_specs=(pl.BlockSpec((1, 8, 128), lambda i: (i, 0, 0)),
                   pl.BlockSpec((1, 8, tile_n), lambda i: (i, 0, 0))),
        out_shape=(jax.ShapeDtypeStruct((num_tiles, 8, 128), jnp.float32),
                   jax.ShapeDtypeStruct((num_tiles, 8, tile_n), jnp.float32)),
        compiler_params=pltpu.CompilerParams(
            dimension_semantics=("parallel",)),
    )(packed, gen_table, bg, tri, disc_lut)

    # ---- finish the means / weighted accuracies from per-tile partial sums ----
    s = jnp.sum(partials[:, 0, :], axis=0)
    mlm_loss = s[_MLM_SUM] / jnp.maximum(s[_MLM_CNT], 1.0)
    disc_loss = s[_BCE_SUM] / jnp.maximum(s[_NONPAD_CNT], 1.0)
    gen_acc = s[_GEN_COR] / jnp.maximum(s[_MASK_CNT], 1.0)
    disc_acc = (0.5 * s[_DISC_COR_M] / jnp.maximum(s[_MASK_CNT], 1.0)
                + 0.5 * s[_DISC_COR_U] / jnp.maximum(s[_UNMASK_CNT], 1.0))

    disc_labels = dout[:, 0, :].reshape(n_pad)[:N].reshape(B, T)
    disc_pred = dout[:, 1, :].reshape(n_pad)[:N].reshape(B, T)

    # TODO(synk): `mse_motif_loss` is referenced but never defined in the reference forward; emit 0.
    mse_motif_loss = jnp.float32(0.0)
    total = GEN_WEIGHT * mlm_loss + DISC_WEIGHT * disc_loss

    return [total, mlm_loss, mse_motif_loss, disc_loss, gen_acc, disc_acc,
            disc_labels, disc_pred]


# -------------------------------- main ----------------------------------------
if __name__ == "__main__":
    key = jax.random.PRNGKey(0)
    k_params, k_input, k_fwd = jax.random.split(key, 3)

    params = init_params(k_params)

    B, T = 2, 8
    input_ids = jax.random.randint(k_input, (B, T), 3, V).astype(jnp.int32)
    input_ids = input_ids.at[:, -1].set(PAD_ID)   # some pad tokens

    out = electric_forward(input_ids, params, k_fwd)
    jax.block_until_ready(out)
    print("KERNEL_OK")
</pallas_src>

<mosaic_0001>
module attributes {stable_mosaic.version = 11 : i64} {
  func.func @electric_fused_kernel(%arg0: i32, %arg1: memref<8x8xi32, #tpu.memory_space<vmem>>, %arg2: memref<128x128xbf16, #tpu.memory_space<vmem>>, %arg3: memref<1x128xf32, #tpu.memory_space<vmem>>, %arg4: memref<128x128xbf16, #tpu.memory_space<vmem>>, %arg5: memref<1x128xf32, #tpu.memory_space<vmem>>, %arg6: memref<1x8x128xf32, #tpu.memory_space<vmem>>, %arg7: memref<1x8x8xf32, #tpu.memory_space<vmem>>) attributes {dimension_semantics = [#tpu.dimension_semantics<parallel>], iteration_bounds = array<i64: 2>, scalar_prefetch = 0 : i64, scratch_operands = 0 : i64, tpu.core_type = #tpu.core_type<tc>, window_params = [{transform_indices = @transform_0, window_bounds = array<i64: 8, 8>}, {pipeline_mode = #tpu.pipeline_mode<synchronous>, transform_indices = @transform_1, window_bounds = array<i64: 128, 128>}, {pipeline_mode = #tpu.pipeline_mode<synchronous>, transform_indices = @transform_2, window_bounds = array<i64: 1, 128>}, {pipeline_mode = #tpu.pipeline_mode<synchronous>, transform_indices = @transform_3, window_bounds = array<i64: 128, 128>}, {pipeline_mode = #tpu.pipeline_mode<synchronous>, transform_indices = @transform_4, window_bounds = array<i64: 1, 128>}, {transform_indices = @transform_5, window_bounds = array<i64: 1, 8, 128>}, {transform_indices = @transform_6, window_bounds = array<i64: 1, 8, 8>}]} {
    %cst = arith.constant 0.000000e+00 : f32
    %0 = vector.broadcast %cst : f32 to vector<1x128xf32>
    %1 = tpu.iota {dimensions = array<i32: 1>} : vector<1x128xi32>
    %c0 = arith.constant 0 : index
    %c0_0 = arith.constant 0 : index
    %2 = vector.load %arg1[%c0, %c0_0] : memref<8x8xi32, #tpu.memory_space<vmem>>, vector<8x8xi32>
    %3 = vector.extract_strided_slice %2 {offsets = [0, 0], sizes = [8, 1], strides = [1, 1]} : vector<8x8xi32> to vector<8x1xi32>
    %4 = vector.extract_strided_slice %2 {offsets = [0, 1], sizes = [8, 1], strides = [1, 1]} : vector<8x8xi32> to vector<8x1xi32>
    %5 = vector.extract_strided_slice %2 {offsets = [0, 2], sizes = [8, 1], strides = [1, 1]} : vector<8x8xi32> to vector<8x1xi32>
    %6 = vector.extract_strided_slice %2 {offsets = [0, 3], sizes = [8, 1], strides = [1, 1]} : vector<8x8xi32> to vector<8x1xi32>
    %7 = vector.extract_strided_slice %2 {offsets = [0, 4], sizes = [8, 1], strides = [1, 1]} : vector<8x8xi32> to vector<8x1xi32>
    %8 = vector.extract_strided_slice %2 {offsets = [0, 5], sizes = [8, 1], strides = [1, 1]} : vector<8x8xi32> to vector<8x1xi32>
    %9 = arith.sitofp %8 : vector<8x1xi32> to vector<8x1xf32>
    %cst_1 = arith.constant 5.000000e-01 : f32
    %10 = vector.broadcast %cst_1 : f32 to vector<8x1xf32>
    %11 = arith.addf %9, %10 : vector<8x1xf32>
    %cst_2 = arith.constant 1.1920929E-7 : f32
    %12 = vector.broadcast %cst_2 : f32 to vector<8x1xf32>
    %13 = arith.mulf %11, %12 : vector<8x1xf32>
    %14 = tpu.iota {dimensions = array<i32: 1>} : vector<8x128xi32>
    %15 = vector.broadcast %3 : vector<8x1xi32> to vector<8x128xi32>
    %16 = arith.cmpi eq, %14, %15 : vector<8x128xi32>
    %17 = arith.extui %16 : vector<8x128xi1> to vector<8x128xi32>
    %18 = arith.sitofp %17 : vector<8x128xi32> to vector<8x128xf32>
    %19 = arith.truncf %18 : vector<8x128xf32> to vector<8x128xbf16>
    %c0_3 = arith.constant 0 : index
    %c0_4 = arith.constant 0 : index
    %20 = vector.load %arg2[%c0_3, %c0_4] : memref<128x128xbf16, #tpu.memory_space<vmem>>, vector<128x128xbf16>
    %cst_5 = arith.constant dense<0.000000e+00> : vector<8x128xf32>
    %21 = tpu.matmul %19, %20, %cst_5 {dimension_numbers = #tpu.dot_dimension_numbers<[1], [0], [0], [1], [0, 0, 1, 1], [], []>} : vector<8x128xbf16>, vector<128x128xbf16>, vector<8x128xf32> -> vector<8x128xf32>
    %c0_6 = arith.constant 0 : index
    %c0_7 = arith.constant 0 : index
    %22 = vector.load %arg3[%c0_6, %c0_7] : memref<1x128xf32, #tpu.memory_space<vmem>>, vector<1x128xf32>
    %23 = vector.broadcast %22 : vector<1x128xf32> to vector<8x128xf32>
    %24 = arith.addf %21, %23 : vector<8x128xf32>
    %cst_8 = arith.constant dense<0xFF800000> : vector<8xf32>
    %25 = vector.multi_reduction <maximumf>, %24, %cst_8 [1] : vector<8x128xf32> to vector<8xf32>
    %26 = vector.shape_cast %25 : vector<8xf32> to vector<8x1xf32>
    %27 = vector.broadcast %26 : vector<8x1xf32> to vector<8x128xf32>
    %28 = arith.subf %24, %27 : vector<8x128xf32>
    %29 = math.exp %28 : vector<8x128xf32>
    %cst_9 = arith.constant dense<0.000000e+00> : vector<8xf32>
    %30 = vector.multi_reduction <add>, %29, %cst_9 [1] : vector<8x128xf32> to vector<8xf32>
    %31 = vector.shape_cast %30 : vector<8xf32> to vector<8x1xf32>
    %32 = math.log %31 : vector<8x1xf32>
    %33 = arith.addf %26, %32 : vector<8x1xf32>
    %34 = vector.broadcast %5 : vector<8x1xi32> to vector<8x128xi32>
    %35 = arith.cmpi eq, %14, %34 : vector<8x128xi32>
    %cst_10 = arith.constant 0.000000e+00 : f32
    %36 = vector.broadcast %cst_10 : f32 to vector<8x128xf32>
    %37 = arith.select %35, %24, %36 : vector<8x128xi1>, vector<8x128xf32>
    %cst_11 = arith.constant dense<0.000000e+00> : vector<8xf32>
    %38 = vector.multi_reduction <add>, %37, %cst_11 [1] : vector<8x128xf32> to vector<8xf32>
    %39 = vector.shape_cast %38 : vector<8xf32> to vector<8x1xf32>
    %c0_i32 = arith.constant 0 : i32
    %40 = vector.broadcast %c0_i32 : i32 to vector<8x1xi32>
    %41 = arith.cmpi ne, %5, %40 : vector<8x1xi32>
    %42 = arith.extui %41 : vector<8x1xi1> to vector<8x1xi32>
    %43 = arith.sitofp %42 : vector<8x1xi32> to vector<8x1xf32>
    %44 = arith.subf %33, %39 : vector<8x1xf32>
    %45 = arith.mulf %44, %43 : vector<8x1xf32>
    %46 = vector.shape_cast %45 : vector<8x1xf32> to vector<1x8x1xf32>
    %cst_12 = arith.constant dense<0.000000e+00> : vector<1xf32>
    %47 = vector.multi_reduction <add>, %46, %cst_12 [1, 2] : vector<1x8x1xf32> to vector<1xf32>
    %48 = vector.shape_cast %47 : vector<1xf32> to vector<1x1x1xf32>
    %49 = vector.extract %48[0, 0, 0] : f32 from vector<1x1x1xf32>
    %50 = vector.broadcast %49 : f32 to vector<1x1xf32>
    %51 = vector.shape_cast %43 : vector<8x1xf32> to vector<1x8x1xf32>
    %cst_13 = arith.constant dense<0.000000e+00> : vector<1xf32>
    %52 = vector.multi_reduction <add>, %51, %cst_13 [1, 2] : vector<1x8x1xf32> to vector<1xf32>
    %53 = vector.shape_cast %52 : vector<1xf32> to vector<1x1x1xf32>
    %54 = vector.extract %53[0, 0, 0] : f32 from vector<1x1x1xf32>
    %55 = vector.broadcast %54 : f32 to vector<1x1xf32>
    %56 = vector.broadcast %26 : vector<8x1xf32> to vector<8x128xf32>
    %57 = arith.cmpf oge, %24, %56 : vector<8x128xf32>
    %c128_i32 = arith.constant 128 : i32
    %58 = vector.broadcast %c128_i32 : i32 to vector<8x128xi32>
    %59 = arith.select %57, %14, %58 : vector<8x128xi1>, vector<8x128xi32>
    %cst_14 = arith.constant dense<2147483647> : vector<8xi32>
    %60 = vector.multi_reduction <minsi>, %59, %cst_14 [1] : vector<8x128xi32> to vector<8xi32>
    %61 = vector.shape_cast %60 : vector<8xi32> to vector<8x1xi32>
    %62 = arith.truncf %29 : vector<8x128xf32> to vector<8x128xbf16>
    %c0_15 = arith.constant 0 : index
    %c0_16 = arith.constant 0 : index
    %63 = vector.load %arg4[%c0_15, %c0_16] : memref<128x128xbf16, #tpu.memory_space<vmem>>, vector<128x128xbf16>
    %cst_17 = arith.constant dense<0.000000e+00> : vector<8x128xf32>
    %64 = tpu.matmul %62, %63, %cst_17 {dimension_numbers = #tpu.dot_dimension_numbers<[1], [0], [0], [1], [0, 0, 1, 1], [], []>} : vector<8x128xbf16>, vector<128x128xbf16>, vector<8x128xf32> -> vector<8x128xf32>
    %65 = vector.extract_strided_slice %64 {offsets = [0, 127], sizes = [8, 1], strides = [1, 1]} : vector<8x128xf32> to vector<8x1xf32>
    %66 = arith.mulf %13, %65 : vector<8x1xf32>
    %67 = vector.broadcast %66 : vector<8x1xf32> to vector<8x128xf32>
    %68 = arith.cmpf oge, %64, %67 : vector<8x128xf32>
    %c128_i32_18 = arith.constant 128 : i32
    %69 = vector.broadcast %c128_i32_18 : i32 to vector<8x128xi32>
    %70 = arith.select %68, %14, %69 : vector<8x128xi1>, vector<8x128xi32>
    %cst_19 = arith.constant dense<2147483647> : vector<8xi32>
    %71 = vector.multi_reduction <minsi>, %70, %cst_19 [1] : vector<8x128xi32> to vector<8xi32>
    %72 = vector.shape_cast %71 : vector<8xi32> to vector<8x1xi32>
    %c31_i32 = arith.constant 31 : i32
    %73 = vector.broadcast %c31_i32 : i32 to vector<8x1xi32>
    %74 = arith.minsi %72, %73 : vector<8x1xi32>
    %c0_i32_20 = arith.constant 0 : i32
    %75 = vector.broadcast %c0_i32_20 : i32 to vector<8x1xi32>
    %76 = arith.cmpi ne, %6, %75 : vector<8x1xi32>
    %77 = arith.select %76, %74, %4 : vector<8x1xi1>, vector<8x1xi32>
    %78 = vector.broadcast %77 : vector<8x1xi32> to vector<8x128xi32>
    %79 = arith.cmpi eq, %14, %78 : vector<8x128xi32>
    %c0_21 = arith.constant 0 : index
    %c0_22 = arith.constant 0 : index
    %80 = vector.load %arg5[%c0_21, %c0_22] : memref<1x128xf32, #tpu.memory_space<vmem>>, vector<1x128xf32>
    %cst_23 = arith.constant 0.000000e+00 : f32
    %81 = vector.shape_cast %80 : vector<1x128xf32> to vector<1x128xf32>
    %82 = vector.broadcast %81 : vector<1x128xf32> to vector<8x128xf32>
    %83 = vector.broadcast %cst_23 : f32 to vector<8x128xf32>
    %84 = arith.select %79, %82, %83 : vector<8x128xi1>, vector<8x128xf32>
    %cst_24 = arith.constant dense<0.000000e+00> : vector<8xf32>
    %85 = vector.multi_reduction <add>, %84, %cst_24 [1] : vector<8x128xf32> to vector<8xf32>
    %86 = vector.shape_cast %85 : vector<8xf32> to vector<8x1xf32>
    %87 = arith.cmpi ne, %4, %77 : vector<8x1xi32>
    %88 = arith.extui %87 : vector<8x1xi1> to vector<8x1xi32>
    %89 = arith.sitofp %88 : vector<8x1xi32> to vector<8x1xf32>
    %c0_i32_25 = arith.constant 0 : i32
    %90 = vector.broadcast %c0_i32_25 : i32 to vector<8x1xi32>
    %91 = arith.cmpi ne, %4, %90 : vector<8x1xi32>
    %92 = arith.extui %91 : vector<8x1xi1> to vector<8x1xi32>
    %93 = arith.sitofp %92 : vector<8x1xi32> to vector<8x1xf32>
    %cst_26 = arith.constant 0.000000e+00 : f32
    %94 = vector.broadcast %cst_26 : f32 to vector<8x1xf32>
    %95 = arith.maximumf %86, %94 : vector<8x1xf32>
    %96 = arith.mulf %86, %89 : vector<8x1xf32>
    %97 = arith.subf %95, %96 : vector<8x1xf32>
    %98 = math.absf %86 : vector<8x1xf32>
    %cst_27 = arith.constant 0.000000e+00 : f32
    %99 = vector.broadcast %cst_27 : f32 to vector<8x1xf32>
    %100 = arith.subf %99, %98 : vector<8x1xf32>
    %101 = math.exp %100 : vector<8x1xf32>
    %cst_28 = arith.constant 1.000000e+00 : f32
    %102 = vector.broadcast %cst_28 : f32 to vector<8x1xf32>
    %103 = arith.addf %102, %101 : vector<8x1xf32>
    %104 = math.log %103 : vector<8x1xf32>
    %105 = arith.addf %97, %104 : vector<8x1xf32>
    %106 = arith.mulf %105, %93 : vector<8x1xf32>
    %107 = vector.shape_cast %106 : vector<8x1xf32> to vector<1x8x1xf32>
    %cst_29 = arith.constant dense<0.000000e+00> : vector<1xf32>
    %108 = vector.multi_reduction <add>, %107, %cst_29 [1, 2] : vector<1x8x1xf32> to vector<1xf32>
    %109 = vector.shape_cast %108 : vector<1xf32> to vector<1x1x1xf32>
    %110 = vector.extract %109[0, 0, 0] : f32 from vector<1x1x1xf32>
    %111 = vector.broadcast %110 : f32 to vector<1x1xf32>
    %112 = vector.shape_cast %93 : vector<8x1xf32> to vector<1x8x1xf32>
    %cst_30 = arith.constant dense<0.000000e+00> : vector<1xf32>
    %113 = vector.multi_reduction <add>, %112, %cst_30 [1, 2] : vector<1x8x1xf32> to vector<1xf32>
    %114 = vector.shape_cast %113 : vector<1xf32> to vector<1x1x1xf32>
    %115 = vector.extract %114[0, 0, 0] : f32 from vector<1x1x1xf32>
    %116 = vector.broadcast %115 : f32 to vector<1x1xf32>
    %cst_31 = arith.constant 0.000000e+00 : f32
    %117 = vector.broadcast %cst_31 : f32 to vector<8x1xf32>
    %118 = arith.cmpf ogt, %86, %117 : vector<8x1xf32>
    %119 = arith.extui %118 : vector<8x1xi1> to vector<8x1xi32>
    %120 = arith.sitofp %119 : vector<8x1xi32> to vector<8x1xf32>
    %c0_i32_32 = arith.constant 0 : i32
    %121 = vector.broadcast %c0_i32_32 : i32 to vector<8x1xi32>
    %122 = arith.cmpi ne, %6, %121 : vector<8x1xi32>
    %123 = arith.extui %122 : vector<8x1xi1> to vector<8x1xi32>
    %124 = arith.sitofp %123 : vector<8x1xi32> to vector<8x1xf32>
    %c0_i32_33 = arith.constant 0 : i32
    %125 = vector.broadcast %c0_i32_33 : i32 to vector<8x1xi32>
    %126 = arith.cmpi eq, %6, %125 : vector<8x1xi32>
    %c0_i32_34 = arith.constant 0 : i32
    %127 = vector.broadcast %c0_i32_34 : i32 to vector<8x1xi32>
    %128 = arith.cmpi ne, %7, %127 : vector<8x1xi32>
    %129 = arith.andi %126, %128 : vector<8x1xi1>
    %130 = arith.extui %129 : vector<8x1xi1> to vector<8x1xi32>
    %131 = arith.sitofp %130 : vector<8x1xi32> to vector<8x1xf32>
    %132 = vector.shape_cast %124 : vector<8x1xf32> to vector<1x8x1xf32>
    %cst_35 = arith.constant dense<0.000000e+00> : vector<1xf32>
    %133 = vector.multi_reduction <add>, %132, %cst_35 [1, 2] : vector<1x8x1xf32> to vector<1xf32>
    %134 = vector.shape_cast %133 : vector<1xf32> to vector<1x1x1xf32>
    %135 = vector.extract %134[0, 0, 0] : f32 from vector<1x1x1xf32>
    %136 = vector.broadcast %135 : f32 to vector<1x1xf32>
    %137 = vector.shape_cast %131 : vector<8x1xf32> to vector<1x8x1xf32>
    %cst_36 = arith.constant dense<0.000000e+00> : vector<1xf32>
    %138 = vector.multi_reduction <add>, %137, %cst_36 [1, 2] : vector<1x8x1xf32> to vector<1xf32>
    %139 = vector.shape_cast %138 : vector<1xf32> to vector<1x1x1xf32>
    %140 = vector.extract %139[0, 0, 0] : f32 from vector<1x1x1xf32>
    %141 = vector.broadcast %140 : f32 to vector<1x1xf32>
    %142 = arith.cmpi eq, %5, %61 : vector<8x1xi32>
    %143 = arith.extui %142 : vector<8x1xi1> to vector<8x1xi32>
    %144 = arith.sitofp %143 : vector<8x1xi32> to vector<8x1xf32>
    %145 = arith.mulf %144, %124 : vector<8x1xf32>
    %146 = vector.shape_cast %145 : vector<8x1xf32> to vector<1x8x1xf32>
    %cst_37 = arith.constant dense<0.000000e+00> : vector<1xf32>
    %147 = vector.multi_reduction <add>, %146, %cst_37 [1, 2] : vector<1x8x1xf32> to vector<1xf32>
    %148 = vector.shape_cast %147 : vector<1xf32> to vector<1x1x1xf32>
    %149 = vector.extract %148[0, 0, 0] : f32 from vector<1x1x1xf32>
    %150 = vector.broadcast %149 : f32 to vector<1x1xf32>
    %151 = arith.cmpf oeq, %89, %120 : vector<8x1xf32>
    %152 = arith.extui %151 : vector<8x1xi1> to vector<8x1xi32>
    %153 = arith.sitofp %152 : vector<8x1xi32> to vector<8x1xf32>
    %154 = arith.mulf %153, %124 : vector<8x1xf32>
    %155 = vector.shape_cast %154 : vector<8x1xf32> to vector<1x8x1xf32>
    %cst_38 = arith.constant dense<0.000000e+00> : vector<1xf32>
    %156 = vector.multi_reduction <add>, %155, %cst_38 [1, 2] : vector<1x8x1xf32> to vector<1xf32>
    %157 = vector.shape_cast %156 : vector<1xf32> to vector<1x1x1xf32>
    %158 = vector.extract %157[0, 0, 0] : f32 from vector<1x1x1xf32>
    %159 = vector.broadcast %158 : f32 to vector<1x1xf32>
    %160 = arith.mulf %153, %131 : vector<8x1xf32>
    %161 = vector.shape_cast %160 : vector<8x1xf32> to vector<1x8x1xf32>
    %cst_39 = arith.constant dense<0.000000e+00> : vector<1xf32>
    %162 = vector.multi_reduction <add>, %161, %cst_39 [1, 2] : vector<1x8x1xf32> to vector<1xf32>
    %163 = vector.shape_cast %162 : vector<1xf32> to vector<1x1x1xf32>
    %164 = vector.extract %163[0, 0, 0] : f32 from vector<1x1x1xf32>
    %165 = vector.broadcast %164 : f32 to vector<1x1xf32>
    %166 = tpu.iota {dimensions = array<i32: 0>} : vector<8x8xi32>
    %167 = tpu.iota {dimensions = array<i32: 1>} : vector<8x8xi32>
    %168 = arith.cmpi eq, %166, %167 : vector<8x8xi32>
    %cst_40 = arith.constant 0.000000e+00 : f32
    %169 = vector.shape_cast %89 : vector<8x1xf32> to vector<8x1xf32>
    %170 = vector.broadcast %169 : vector<8x1xf32> to vector<8x8xf32>
    %171 = vector.broadcast %cst_40 : f32 to vector<8x8xf32>
    %172 = arith.select %168, %170, %171 : vector<8x8xi1>, vector<8x8xf32>
    %cst_41 = arith.constant dense<0.000000e+00> : vector<8xf32>
    %173 = vector.multi_reduction <add>, %172, %cst_41 [0] : vector<8x8xf32> to vector<8xf32>
    %174 = vector.shape_cast %173 : vector<8xf32> to vector<1x8xf32>
    %cst_42 = arith.constant 0.000000e+00 : f32
    %175 = vector.shape_cast %120 : vector<8x1xf32> to vector<8x1xf32>
    %176 = vector.broadcast %175 : vector<8x1xf32> to vector<8x8xf32>
    %177 = vector.broadcast %cst_42 : f32 to vector<8x8xf32>
    %178 = arith.select %168, %176, %177 : vector<8x8xi1>, vector<8x8xf32>
    %cst_43 = arith.constant dense<0.000000e+00> : vector<8xf32>
    %179 = vector.multi_reduction <add>, %178, %cst_43 [0] : vector<8x8xf32> to vector<8xf32>
    %180 = vector.shape_cast %179 : vector<8xf32> to vector<1x8xf32>
    %181 = tpu.iota {dimensions = array<i32: 0>} : vector<8x8xi32>
    %c0_i32_44 = arith.constant 0 : i32
    %182 = vector.broadcast %c0_i32_44 : i32 to vector<8x8xi32>
    %183 = arith.cmpi eq, %181, %182 : vector<8x8xi32>
    %cst_45 = arith.constant 0.000000e+00 : f32
    %184 = vector.shape_cast %174 : vector<1x8xf32> to vector<1x8xf32>
    %185 = vector.broadcast %184 : vector<1x8xf32> to vector<8x8xf32>
    %186 = vector.broadcast %cst_45 : f32 to vector<8x8xf32>
    %187 = arith.select %183, %185, %186 : vector<8x8xi1>, vector<8x8xf32>
    %c1_i32 = arith.constant 1 : i32
    %188 = vector.broadcast %c1_i32 : i32 to vector<8x8xi32>
    %189 = arith.cmpi eq, %181, %188 : vector<8x8xi32>
    %cst_46 = arith.constant 0.000000e+00 : f32
    %190 = vector.shape_cast %180 : vector<1x8xf32> to vector<1x8xf32>
    %191 = vector.broadcast %190 : vector<1x8xf32> to vector<8x8xf32>
    %192 = vector.broadcast %cst_46 : f32 to vector<8x8xf32>
    %193 = arith.select %189, %191, %192 : vector<8x8xi1>, vector<8x8xf32>
    %194 = arith.addf %187, %193 : vector<8x8xf32>
    %c0_47 = arith.constant 0 : index
    %c0_48 = arith.constant 0 : index
    %c0_49 = arith.constant 0 : index
    %195 = vector.load %arg7[%c0_47, %c0_48, %c0_49] : memref<1x8x8xf32, #tpu.memory_space<vmem>>, vector<1x8x8xf32>
    %196 = vector.shape_cast %195 : vector<1x8x8xf32> to vector<8x8xf32>
    %197 = vector.shape_cast %194 : vector<8x8xf32> to vector<1x8x8xf32>
    tpu.vector_store %arg7[%c0_47, %c0_48, %c0_49], %197 {strides = array<i32>} : memref<1x8x8xf32, #tpu.memory_space<vmem>>, vector<1x8x8xf32>,
    %c0_i32_50 = arith.constant 0 : i32
    %198 = vector.broadcast %c0_i32_50 : i32 to vector<1x128xi32>
    %199 = arith.cmpi eq, %1, %198 : vector<1x128xi32>
    %200 = arith.extui %199 : vector<1x128xi1> to vector<1x128xi32>
    %201 = arith.sitofp %200 : vector<1x128xi32> to vector<1x128xf32>
    %202 = vector.broadcast %50 : vector<1x1xf32> to vector<1x128xf32>
    %203 = arith.mulf %201, %202 : vector<1x128xf32>
    %c1_i32_51 = arith.constant 1 : i32
    %204 = vector.broadcast %c1_i32_51 : i32 to vector<1x128xi32>
    %205 = arith.cmpi eq, %1, %204 : vector<1x128xi32>
    %206 = arith.extui %205 : vector<1x128xi1> to vector<1x128xi32>
    %207 = arith.sitofp %206 : vector<1x128xi32> to vector<1x128xf32>
    %208 = vector.broadcast %55 : vector<1x1xf32> to vector<1x128xf32>
    %209 = arith.mulf %207, %208 : vector<1x128xf32>
    %210 = arith.addf %203, %209 : vector<1x128xf32>
    %c2_i32 = arith.constant 2 : i32
    %211 = vector.broadcast %c2_i32 : i32 to vector<1x128xi32>
    %212 = arith.cmpi eq, %1, %211 : vector<1x128xi32>
    %213 = arith.extui %212 : vector<1x128xi1> to vector<1x128xi32>
    %214 = arith.sitofp %213 : vector<1x128xi32> to vector<1x128xf32>
    %215 = vector.broadcast %111 : vector<1x1xf32> to vector<1x128xf32>
    %216 = arith.mulf %214, %215 : vector<1x128xf32>
    %217 = arith.addf %210, %216 : vector<1x128xf32>
    %c3_i32 = arith.constant 3 : i32
    %218 = vector.broadcast %c3_i32 : i32 to vector<1x128xi32>
    %219 = arith.cmpi eq, %1, %218 : vector<1x128xi32>
    %220 = arith.extui %219 : vector<1x128xi1> to vector<1x128xi32>
    %221 = arith.sitofp %220 : vector<1x128xi32> to vector<1x128xf32>
    %222 = vector.broadcast %116 : vector<1x1xf32> to vector<1x128xf32>
    %223 = arith.mulf %221, %222 : vector<1x128xf32>
    %224 = arith.addf %217, %223 : vector<1x128xf32>
    %c4_i32 = arith.constant 4 : i32
    %225 = vector.broadcast %c4_i32 : i32 to vector<1x128xi32>
    %226 = arith.cmpi eq, %1, %225 : vector<1x128xi32>
    %227 = arith.extui %226 : vector<1x128xi1> to vector<1x128xi32>
    %228 = arith.sitofp %227 : vector<1x128xi32> to vector<1x128xf32>
    %229 = vector.broadcast %150 : vector<1x1xf32> to vector<1x128xf32>
    %230 = arith.mulf %228, %229 : vector<1x128xf32>
    %231 = arith.addf %224, %230 : vector<1x128xf32>
    %c5_i32 = arith.constant 5 : i32
    %232 = vector.broadcast %c5_i32 : i32 to vector<1x128xi32>
    %233 = arith.cmpi eq, %1, %232 : vector<1x128xi32>
    %234 = arith.extui %233 : vector<1x128xi1> to vector<1x128xi32>
    %235 = arith.sitofp %234 : vector<1x128xi32> to vector<1x128xf32>
    %236 = vector.broadcast %136 : vector<1x1xf32> to vector<1x128xf32>
    %237 = arith.mulf %235, %236 : vector<1x128xf32>
    %238 = arith.addf %231, %237 : vector<1x128xf32>
    %c6_i32 = arith.constant 6 : i32
    %239 = vector.broadcast %c6_i32 : i32 to vector<1x128xi32>
    %240 = arith.cmpi eq, %1, %239 : vector<1x128xi32>
    %241 = arith.extui %240 : vector<1x128xi1> to vector<1x128xi32>
    %242 = arith.sitofp %241 : vector<1x128xi32> to vector<1x128xf32>
    %243 = vector.broadcast %159 : vector<1x1xf32> to vector<1x128xf32>
    %244 = arith.mulf %242, %243 : vector<1x128xf32>
    %245 = arith.addf %238, %244 : vector<1x128xf32>
    %c7_i32 = arith.constant 7 : i32
    %246 = vector.broadcast %c7_i32 : i32 to vector<1x128xi32>
    %247 = arith.cmpi eq, %1, %246 : vector<1x128xi32>
    %248 = arith.extui %247 : vector<1x128xi1> to vector<1x128xi32>
    %249 = arith.sitofp %248 : vector<1x128xi32> to vector<1x128xf32>
    %250 = vector.broadcast %165 : vector<1x1xf32> to vector<1x128xf32>
    %251 = arith.mulf %249, %250 : vector<1x128xf32>
    %252 = arith.addf %245, %251 : vector<1x128xf32>
    %c8_i32 = arith.constant 8 : i32
    %253 = vector.broadcast %c8_i32 : i32 to vector<1x128xi32>
    %254 = arith.cmpi eq, %1, %253 : vector<1x128xi32>
    %255 = arith.extui %254 : vector<1x128xi1> to vector<1x128xi32>
    %256 = arith.sitofp %255 : vector<1x128xi32> to vector<1x128xf32>
    %257 = vector.broadcast %141 : vector<1x1xf32> to vector<1x128xf32>
    %258 = arith.mulf %256, %257 : vector<1x128xf32>
    %259 = arith.addf %252, %258 : vector<1x128xf32>
    %260 = arith.addf %0, %259 : vector<1x128xf32>
    %261 = vector.shape_cast %260 : vector<1x128xf32> to vector<1x128xf32>
    %262 = vector.broadcast %261 : vector<1x128xf32> to vector<8x128xf32>
    %c0_52 = arith.constant 0 : index
    %c0_53 = arith.constant 0 : index
    %c0_54 = arith.constant 0 : index
    %263 = vector.load %arg6[%c0_52, %c0_53, %c0_54] : memref<1x8x128xf32, #tpu.memory_space<vmem>>, vector<1x8x128xf32>
    %264 = vector.shape_cast %263 : vector<1x8x128xf32> to vector<8x128xf32>
    %265 = vector.shape_cast %262 : vector<8x128xf32> to vector<1x8x128xf32>
    tpu.vector_store %arg6[%c0_52, %c0_53, %c0_54], %265 {strides = array<i32>} : memref<1x8x128xf32, #tpu.memory_space<vmem>>, vector<1x8x128xf32>,
    return
  }
  func.func @transform_0(%arg0: i32) -> (i32, i32) {
    %c0_i32 = arith.constant 0 : i32
    %c0_i32_0 = arith.constant 0 : i32
    return %arg0, %c0_i32 : i32, i32
  }
  func.func @transform_1(%arg0: i32) -> (i32, i32) {
    %c0_i32 = arith.constant 0 : i32
    %c0_i32_0 = arith.constant 0 : i32
    %c0_i32_1 = arith.constant 0 : i32
    return %c0_i32, %c0_i32_0 : i32, i32
  }
  func.func @transform_2(%arg0: i32) -> (i32, i32) {
    %c0_i32 = arith.constant 0 : i32
    %c0_i32_0 = arith.constant 0 : i32
    %c0_i32_1 = arith.constant 0 : i32
    return %c0_i32, %c0_i32_0 : i32, i32
  }
  func.func @transform_3(%arg0: i32) -> (i32, i32) {
    %c0_i32 = arith.constant 0 : i32
    %c0_i32_0 = arith.constant 0 : i32
    %c0_i32_1 = arith.constant 0 : i32
    return %c0_i32, %c0_i32_0 : i32, i32
  }
  func.func @transform_4(%arg0: i32) -> (i32, i32) {
    %c0_i32 = arith.constant 0 : i32
    %c0_i32_0 = arith.constant 0 : i32
    %c0_i32_1 = arith.constant 0 : i32
    return %c0_i32, %c0_i32_0 : i32, i32
  }
  func.func @transform_5(%arg0: i32) -> (i32, i32, i32) {
    %c0_i32 = arith.constant 0 : i32
    %c0_i32_0 = arith.constant 0 : i32
    %c0_i32_1 = arith.constant 0 : i32
    return %arg0, %c0_i32, %c0_i32_0 : i32, i32, i32
  }
  func.func @transform_6(%arg0: i32) -> (i32, i32, i32) {
    %c0_i32 = arith.constant 0 : i32
    %c0_i32_0 = arith.constant 0 : i32
    %c0_i32_1 = arith.constant 0 : i32
    return %arg0, %c0_i32, %c0_i32_0 : i32, i32, i32
  }
}

</mosaic_0001>

<llo_original>
// kernel: tpu_custom_call.1
$region0: #{tpu_custom_call.1}
  #allocation0 [shape = 'u32[]', space=smem, size = 0x4, offset = 0x4, fixed_abs, tag = 'smem constant byte address 0x4 - core index']
  #allocation1 [shape = 'u32[72,128]{1,0:T(1,128)}', space=vmem, size = 0x9000, scoped, tag = 'internal scratch']
  %s0 = inlined_call_operand.vmem [shape: s32[16,8], index: 0, kind: input, shape index: {}]
  %s1 = inlined_call_operand.hbm [shape: bf16[128,128], index: 1, kind: input, shape index: {}]
  %s2 = inlined_call_operand.vmem [shape: f32[1,128], index: 2, kind: input, shape index: {}]
  %s3 = inlined_call_operand.hbm [shape: bf16[128,128], index: 3, kind: input, shape index: {}]
  %s4 = inlined_call_operand.vmem [shape: f32[1,128], index: 4, kind: input, shape index: {}]
  %s5 = inlined_call_operand.hbm [shape: f32[2,8,128], index: 5, kind: output, shape index: {0}]
  %s6 = inlined_call_operand.hbm [shape: f32[2,8,8], index: 6, kind: output, shape index: {1}]
  %7 = xla_tuple %s5, %s6
  %s8 = sld [smem:[#allocation0]]
  $region69: #{tpu_custom_call.1} parent=0
    _
  %s10 = ssub.s32 1, %s8
  %s11 = scalar_select 0, %s10, %s8
  $region1: #{tpu_custom_call.1} parent=0
    #allocation2 [shape = 'u8[32768]{0}', space=vmem, size = 0x8000, scoped, tag = 'input window, operand 1, single buffered']
    #allocation3 [shape = 's32[2]{0}', space=sflag, size = 0x8, scoped, tag = 'scoped memory for tpu_custom_call.1']
    #allocation4 [shape = 's32[2]{0}', space=sflag, size = 0x8, scoped, tag = 'scoped memory for tpu_custom_call.1']
    #allocation5 [shape = 'u8[32768]{0}', space=vmem, size = 0x8000, scoped, tag = 'input window, operand 3, single buffered']
    #allocation6 [shape = 's32[1]{0}', space=sflag, size = 0x4, scoped, tag = 'scoped memory for tpu_custom_call.1']
    #allocation7 [shape = 'u8[8192]{0}', space=vmem, size = 0x2000, scoped, tag = 'output window, operand 0']
    #allocation8 [shape = 'u8[8192]{0}', space=vmem, size = 0x2000, scoped, tag = 'output window, operand 1']
    #allocation9 [shape = 's32[2]{0}', space=sflag, size = 0x8, scoped, tag = 'scoped memory for tpu_custom_call.1']
    %12 = vsyncpa [#allocation3], 0
    %13 = vsyncpa [#allocation6], 0
    %14 = vsyncpa [#allocation4], 0
    %s15 = scalar_lea.sflag [#allocation4], 1
    %16 = vsyncpa %s15, 0
    %17 = vsyncpa [#allocation9], 0
    %s18 = scalar_lea.sflag [#allocation9], 1
    %19 = vsyncpa %s18, 0
    loop: start=0, step=1, limit=4
    $region2: #{tpu_custom_call.1} parent=1 // loop_pre_header
      _
    $region3: #{tpu_custom_call.1} parent=1 // loop_header
      %s21 = sphi 0, %s25
      %p22 = scmp.ge.s32.totalorder %s21, 4
      %s31 = sphi 0, %s33
      %s34 = sphi 0, %s31
      %s35 = sphi 0, %s34
      %s51 = sphi 0, %s35
      %s55 = sphi 0, %s55
      %s57 = sphi 0, %s55
      %s58 = sphi 0, %s57
      %s72 = sphi 0, %s58
      %s76 = sphi 0, %s76
      %s78 = sphi 0, %s76
      %s79 = sphi 0, %s78
      %s93 = sphi 0, %s79
      %s97 = sphi 0, %s97
      %s99 = sphi 0, %s97
      %s100 = sphi 0, %s99
      %s114 = sphi 0, %s100
      %s118 = sphi 0, %s118
      %s120 = sphi 0, %s118
      %s121 = sphi 0, %s120
      %s135 = sphi 0, %s121
      %s141 = sphi 0, %s143
      %s144 = sphi 0, %s141
      %s145 = sphi 0, %s144
      %s161 = sphi 0, %s145
      %s167 = sphi 0, %s169
      %s170 = sphi 0, %s167
      %s171 = sphi 0, %s170
      %s187 = sphi 0, %s171
    $region4: #{tpu_custom_call.1} parent=1 // loop_header_branch
      %24 = sbr.rel (%p22) target = $region8
    $region5: #{tpu_custom_call.1} parent=1 // loop_body
      %s26 = ssub.s32 %s21, 1
      %s27 = ssub.s32 %s21, 2
      %s28 = sadd.s32 %s21, 1
      %s29 = ssub.s32 %s21, %s28
      %p30 = scmp.eq.s32.totalorder %s29, 0
      %s32 = sadd.s32 %s31, 1
      %s33 = scalar_select %p30, %s31, %s32
      %p36 = pneg %p30
      %p37 = scmp.eq.s32.totalorder %s21, 1
      %p38 = por %p36, %p37
      %p39 = scmp.ne.s32.totalorder %s31, %s34
      %p40 = scmp.eq.s32.totalorder %s21, 0
      %p41 = por %p39, %p40
      %p42 = scmp.ne.s32.totalorder %s31, %s34
      %p43 = scmp.eq.s32.totalorder %s26, 1
      %p44 = por %p42, %p43
      %p45 = scmp.ne.s32.totalorder %s34, %s35
      %p46 = scmp.eq.s32.totalorder %s26, 0
      %p47 = por %p45, %p46
      %p48 = scmp.ne.s32.totalorder %s34, %s35
      %p49 = scmp.eq.s32.totalorder %s27, 1
      %p50 = por %p48, %p49
      %p52 = scmp.ne.s32.totalorder %s35, %s51
      %p53 = scmp.eq.s32.totalorder %s27, 0
      %p54 = por %p52, %p53
      %s56 = sadd.s32 %s55, 1
      %p59 = scmp.eq.s32.totalorder %s21, 1
      %p60 = scmp.ne.s32.totalorder %s55, %s57
      %p61 = scmp.eq.s32.totalorder %s21, 0
      %p62 = por %p60, %p61
      %p63 = scmp.ne.s32.totalorder %s55, %s57
      %p64 = scmp.eq.s32.totalorder %s26, 1
      %p65 = por %p63, %p64
      %p66 = scmp.ne.s32.totalorder %s57, %s58
      %p67 = scmp.eq.s32.totalorder %s26, 0
      %p68 = por %p66, %p67
      %p69 = scmp.ne.s32.totalorder %s57, %s58
      %p70 = scmp.eq.s32.totalorder %s27, 1
      %p71 = por %p69, %p70
      %p73 = scmp.ne.s32.totalorder %s58, %s72
      %p74 = scmp.eq.s32.totalorder %s27, 0
      %p75 = por %p73, %p74
      %s77 = sadd.s32 %s76, 1
      %p80 = scmp.eq.s32.totalorder %s21, 1
      %p81 = scmp.ne.s32.totalorder %s76, %s78
      %p82 = scmp.eq.s32.totalorder %s21, 0
      %p83 = por %p81, %p82
      %p84 = scmp.ne.s32.totalorder %s76, %s78
      %p85 = scmp.eq.s32.totalorder %s26, 1
      %p86 = por %p84, %p85
      %p87 = scmp.ne.s32.totalorder %s78, %s79
      %p88 = scmp.eq.s32.totalorder %s26, 0
      %p89 = por %p87, %p88
      %p90 = scmp.ne.s32.totalorder %s78, %s79
      %p91 = scmp.eq.s32.totalorder %s27, 1
      %p92 = por %p90, %p91
      %p94 = scmp.ne.s32.totalorder %s79, %s93
      %p95 = scmp.eq.s32.totalorder %s27, 0
      %p96 = por %p94, %p95
      %s98 = sadd.s32 %s97, 1
      %p101 = scmp.eq.s32.totalorder %s21, 1
      %p102 = scmp.ne.s32.totalorder %s97, %s99
      %p103 = scmp.eq.s32.totalorder %s21, 0
      %p104 = por %p102, %p103
      %p105 = scmp.ne.s32.totalorder %s97, %s99
      %p106 = scmp.eq.s32.totalorder %s26, 1
      %p107 = por %p105, %p106
      %p108 = scmp.ne.s32.totalorder %s99, %s100
      %p109 = scmp.eq.s32.totalorder %s26, 0
      %p110 = por %p108, %p109
      %p111 = scmp.ne.s32.totalorder %s99, %s100
      %p112 = scmp.eq.s32.totalorder %s27, 1
      %p113 = por %p111, %p112
      %p115 = scmp.ne.s32.totalorder %s100, %s114
      %p116 = scmp.eq.s32.totalorder %s27, 0
      %p117 = por %p115, %p116
      %s119 = sadd.s32 %s118, 1
      %p122 = scmp.eq.s32.totalorder %s21, 1
      %p123 = scmp.ne.s32.totalorder %s118, %s120
      %p124 = scmp.eq.s32.totalorder %s21, 0
      %p125 = por %p123, %p124
      %p126 = scmp.ne.s32.totalorder %s118, %s120
      %p127 = scmp.eq.s32.totalorder %s26, 1
      %p128 = por %p126, %p127
      %p129 = scmp.ne.s32.totalorder %s120, %s121
      %p130 = scmp.eq.s32.totalorder %s26, 0
      %p131 = por %p129, %p130
      %p132 = scmp.ne.s32.totalorder %s120, %s121
      %p133 = scmp.eq.s32.totalorder %s27, 1
      %p134 = por %p132, %p133
      %p136 = scmp.ne.s32.totalorder %s121, %s135
      %p137 = scmp.eq.s32.totalorder %s27, 0
      %p138 = por %p136, %p137
      %s139 = ssub.s32 %s21, %s28
      %p140 = scmp.eq.s32.totalorder %s139, 0
      %s142 = sadd.s32 %s141, 1
      %s143 = scalar_select %p140, %s141, %s142
      %p146 = pneg %p140
      %p147 = scmp.eq.s32.totalorder %s21, 1
      %p148 = por %p146, %p147
      %p149 = scmp.ne.s32.totalorder %s141, %s144
      %p150 = scmp.eq.s32.totalorder %s21, 0
      %p151 = por %p149, %p150
      %p152 = scmp.ne.s32.totalorder %s141, %s144
      %p153 = scmp.eq.s32.totalorder %s26, 1
      %p154 = por %p152, %p153
      %p155 = scmp.ne.s32.totalorder %s144, %s145
      %p156 = scmp.eq.s32.totalorder %s26, 0
      %p157 = por %p155, %p156
      %p158 = scmp.ne.s32.totalorder %s144, %s145
      %p159 = scmp.eq.s32.totalorder %s27, 1
      %p160 = por %p158, %p159
      %p162 = scmp.ne.s32.totalorder %s145, %s161
      %p163 = scmp.eq.s32.totalorder %s27, 0
      %p164 = por %p162, %p163
      %s165 = ssub.s32 %s21, %s28
      %p166 = scmp.eq.s32.totalorder %s165, 0
      %s168 = sadd.s32 %s167, 1
      %s169 = scalar_select %p166, %s167, %s168
      %p172 = pneg %p166
      %p173 = scmp.eq.s32.totalorder %s21, 1
      %p174 = por %p172, %p173
      %p175 = scmp.ne.s32.totalorder %s167, %s170
      %p176 = scmp.eq.s32.totalorder %s21, 0
      %p177 = por %p175, %p176
      %p178 = scmp.ne.s32.totalorder %s167, %s170
      %p179 = scmp.eq.s32.totalorder %s26, 1
      %p180 = por %p178, %p179
      %p181 = scmp.ne.s32.totalorder %s170, %s171
      %p182 = scmp.eq.s32.totalorder %s26, 0
      %p183 = por %p181, %p182
      %p184 = scmp.ne.s32.totalorder %s170, %s171
      %p185 = scmp.eq.s32.totalorder %s27, 1
      %p186 = por %p184, %p185
      %p188 = scmp.ne.s32.totalorder %s171, %s187
      %p189 = scmp.eq.s32.totalorder %s27, 0
      %p190 = por %p188, %p189
      %p191 = scmp.le.s32.totalorder 1, %s21
      %p192 = scmp.lt.s32.totalorder %s21, 3
      %p193 = pnand %p191, %p192
      %p194 = pneg %p193
      // Predicated region
      $region9: #{tpu_custom_call.1} parent=5 // pred_check
        _
      $region10: #{tpu_custom_call.1} parent=5 // pred_check_branch
        %196 = sbr.rel (%p193) target = $region12
      $region11: #{tpu_custom_call.1} parent=5 // pred_region
        %s197 = ssub.s32 %s21, 1
        // Predicated region
        $region13: #{tpu_custom_call.1} parent=11 // pred_check
          %p198 = pneg %p68
        $region14: #{tpu_custom_call.1} parent=11 // pred_check_branch
          %200 = sbr.rel (%p198) target = $region16
        $region15: #{tpu_custom_call.1} parent=11 // pred_region
          %202 = vsyncadd [#allocation3], 0
          %s203 = sshll.u32 %s1, 4
          %s204 = int_to_ptr.hbm [resolvable:$true] %s203
          %s205 = sshll.u32 [#allocation2], 4
          %s206 = int_to_ptr.vmem [resolvable:$true] %s205
          %211 = dma.hbm_to_vmem [thread:$0]  %s204, 1024, %s206, [#allocation3], 64, 64, 4
        $region16: #{tpu_custom_call.1} parent=11 // pred_fallthru
          _
        // Predicated region
        $region17: #{tpu_custom_call.1} parent=11 // pred_check
          %p212 = pneg %p89
        $region18: #{tpu_custom_call.1} parent=11 // pred_check_branch
          %214 = sbr.rel (%p212) target = $region20
        $region19: #{tpu_custom_call.1} parent=11 // pred_region
          _
        $region20: #{tpu_custom_call.1} parent=11 // pred_fallthru
          _
        // Predicated region
        $region21: #{tpu_custom_call.1} parent=11 // pred_check
          %p215 = pneg %p110
        $region22: #{tpu_custom_call.1} parent=11 // pred_check_branch
          %217 = sbr.rel (%p215) target = $region24
        $region23: #{tpu_custom_call.1} parent=11 // pred_region
          %219 = vsyncadd [#allocation6], 0
          %s220 = sshll.u32 %s3, 4
          %s221 = int_to_ptr.hbm [resolvable:$true] %s220
          %s222 = sshll.u32 [#allocation5], 4
          %s223 = int_to_ptr.vmem [resolvable:$true] %s222
          %228 = dma.hbm_to_vmem [thread:$0]  %s221, 1024, %s223, [#allocation6], 64, 64, 4
        $region24: #{tpu_custom_call.1} parent=11 // pred_fallthru
          _
        // Predicated region
        $region25: #{tpu_custom_call.1} parent=11 // pred_check
          %p229 = pneg %p131
        $region26: #{tpu_custom_call.1} parent=11 // pred_check_branch
          %231 = sbr.rel (%p229) target = $region28
        $region27: #{tpu_custom_call.1} parent=11 // pred_region
          _
        $region28: #{tpu_custom_call.1} parent=11 // pred_fallthru
          _
      $region12: #{tpu_custom_call.1} parent=5 // pred_fallthru
        _
      %p232 = scmp.lt.s32.totalorder %s21, 2
      // Predicated region
      $region29: #{tpu_custom_call.1} parent=5 // pred_check
        %p233 = pneg %p232
      $region30: #{tpu_custom_call.1} parent=5 // pred_check_branch
        %235 = sbr.rel (%p233) target = $region32
      $region31: #{tpu_custom_call.1} parent=5 // pred_region
        // Predicated region
        $region33: #{tpu_custom_call.1} parent=31 // pred_check
          %p236 = pneg %p41
        $region34: #{tpu_custom_call.1} parent=31 // pred_check_branch
          %238 = sbr.rel (%p236) target = $region36
        $region35: #{tpu_custom_call.1} parent=31 // pred_region
          %p239 = scmp.lt.s32.totalorder %s21, 1
          %s240 = scalar_select %p239, %s21, 1
          %s241 = smul.addr %s240, 8
          %s242 = scalar_lea.vmem %s0, %s241
        $region36: #{tpu_custom_call.1} parent=31 // pred_fallthru
          _
      $region32: #{tpu_custom_call.1} parent=5 // pred_fallthru
        _
      %p243 = scmp.le.s32.totalorder 1, %s21
      %p244 = scmp.lt.s32.totalorder %s21, 3
      %p245 = pnand %p243, %p244
      %p246 = pneg %p245
      // Predicated region
      $region37: #{tpu_custom_call.1} parent=5 // pred_check
        _
      $region38: #{tpu_custom_call.1} parent=5 // pred_check_branch
        %248 = sbr.rel (%p245) target = $region40
      $region39: #{tpu_custom_call.1} parent=5 // pred_region
        %s249 = ssub.s32 %s21, 1
        // Predicated region
        $region41: #{tpu_custom_call.1} parent=39 // pred_check
          %p250 = pneg %p68
        $region42: #{tpu_custom_call.1} parent=39 // pred_check_branch
          %252 = sbr.rel (%p250) target = $region44
        $region43: #{tpu_custom_call.1} parent=39 // pred_region
          %254 = dma.done [#allocation3], 1024
        $region44: #{tpu_custom_call.1} parent=39 // pred_fallthru
          _
        // Predicated region
        $region45: #{tpu_custom_call.1} parent=39 // pred_check
          %p255 = pneg %p110
        $region46: #{tpu_custom_call.1} parent=39 // pred_check_branch
          %257 = sbr.rel (%p255) target = $region48
        $region47: #{tpu_custom_call.1} parent=39 // pred_region
          %259 = dma.done [#allocation6], 1024
        $region48: #{tpu_custom_call.1} parent=39 // pred_fallthru
          _
        %p260 = scmp.lt.s32.totalorder %s26, 1
        %s261 = scalar_select %p260, %s26, 1
        %s262 = smul.addr %s261, 8
        %s263 = scalar_lea.vmem %s0, %s262
        %p264 = pneg %p47
        %p265 = pneg %p44
        %p266 = pneg %p68
        %p267 = pneg %p65
        %p268 = pneg %p89
        %p269 = pneg %p86
        %p270 = pneg %p110
        %p271 = pneg %p107
        %p272 = pneg %p131
        %p273 = pneg %p128
        %p274 = pneg %p157
        %p275 = pneg %p154
        %s276 = sand.u32 %s144, 1
        %s277 = scalar_lea.sflag [#allocation4], %s276
        %s278 = sand.u32 %s144, 1
        %s279 = smul.addr %s278, 8
        %s280 = scalar_lea.vmem [#allocation7], %s279
        %p281 = pneg %p183
        %p282 = pneg %p180
        %s283 = sand.u32 %s170, 1
        %s284 = scalar_lea.sflag [#allocation9], %s283
        %s285 = sand.u32 %s170, 1
        %s286 = smul.addr %s285, 8
        %s287 = scalar_lea.vmem [#allocation8], %s286
        %p288 = scmp.lt.s32.totalorder %s26, 1
        %s289 = scalar_select %p288, %s26, 1
        %s290 = smul.addr %s289, 8
        %s291 = scalar_lea.vmem %s0, %s290
        %v292 = vlaneseq
        %v293 = vand.u32 %v292, 127
        %v294 = vld [vmem:[%s291] sm:$0xff]
        %v295 = vcvt.s32.f32 %v294
        %v296 = vadd.f32 %v295, 0.5
        %v297 = vmul.f32 %v296, 1.1920929e-07
        %298 = vset.pattern.permute.xlu0 0
        %299 = vperm.xlu0 %298, %v294
        %v300 = vpop.permute.xlu0 %299
        %vm301 = vcmp.eq.s32.totalorder %v293, %v300
        %v302 = vsel %vm301, 1, 0
        %v303 = vcvt.s32.f32 %v302
        %v304 = vpack.c.bf16 %v303, %v303
        %v305 = vld [vmem:[#allocation2] sm:$0xf]
        %v306 = vld [vmem:[#allocation2 + $0x4] sm:$0xf]
        %v307 = vld [vmem:[#allocation2 + $0x8] sm:$0xf]
        %v308 = vld [vmem:[#allocation2 + $0xc] sm:$0xf]
        %v309 = vld [vmem:[#allocation2 + $0x10] sm:$0xf]
        %v310 = vld [vmem:[#allocation2 + $0x14] sm:$0xf]
        %v311 = vld [vmem:[#allocation2 + $0x18] sm:$0xf]
        %v312 = vld [vmem:[#allocation2 + $0x1c] sm:$0xf]
        %v313 = vld [vmem:[#allocation2 + $0x20] sm:$0xf]
        %v314 = vld [vmem:[#allocation2 + $0x24] sm:$0xf]
        %v315 = vld [vmem:[#allocation2 + $0x28] sm:$0xf]
        %v316 = vld [vmem:[#allocation2 + $0x2c] sm:$0xf]
        %v317 = vld [vmem:[#allocation2 + $0x30] sm:$0xf]
        %v318 = vld [vmem:[#allocation2 + $0x34] sm:$0xf]
        %v319 = vld [vmem:[#allocation2 + $0x38] sm:$0xf]
        %v320 = vld [vmem:[#allocation2 + $0x3c] sm:$0xf]
        %v321 = vld [vmem:[%s2] sm:$0x1]
        %v323 = vperm.slane %v321, 0
        %v341 = vunpack.c.l.b16 %v305
        %v342 = vunpack.c.l.b16 %v306
        %v343 = vunpack.c.l.b16 %v307
        %v344 = vunpack.c.l.b16 %v308
        %v345 = vunpack.c.l.b16 %v309
        %v346 = vunpack.c.l.b16 %v310
        %v347 = vunpack.c.l.b16 %v311
        %v348 = vunpack.c.l.b16 %v312
        %v349 = vunpack.c.l.b16 %v313
        %v350 = vunpack.c.l.b16 %v314
        %v351 = vunpack.c.l.b16 %v315
        %v352 = vunpack.c.l.b16 %v316
        %v353 = vunpack.c.l.b16 %v317
        %v354 = vunpack.c.l.b16 %v318
        %v355 = vunpack.c.l.b16 %v319
        %v356 = vunpack.c.l.b16 %v320
        %v357 = vpack.c.b16 %v342, %v341
        %v358 = vpack.c.b16 %v344, %v343
        %v359 = vpack.c.b16 %v346, %v345
        %v360 = vpack.c.b16 %v348, %v347
        %v361 = vpack.c.b16 %v350, %v349
        %v362 = vpack.c.b16 %v352, %v351
        %v363 = vpack.c.b16 %v354, %v353
        %v364 = vpack.c.b16 %v356, %v355
        %373 = vmatpush.bf16.msra.mxu0 %v364
        %374 = vmatpush.bf16.msra.mxu0 %v363
        %375 = vmatpush.bf16.msra.mxu0 %v362
        %376 = vmatpush.bf16.msra.mxu0 %v361
        %377 = vmatpush.bf16.msra.mxu0 %v360
        %378 = vmatpush.bf16.msra.mxu0 %v359
        %379 = vmatpush.bf16.msra.mxu0 %v358
        %380 = vmatpush.bf16.msra.mxu0 %v357
        %381 = vmatmul.bf16.gmra.mxu0 %v304
        %v382 = vpop.f32.mrf.mxu0
        %v383 = vadd.f32 %v323, %v382
        %v384 = vpop.f32.mrf.mxu0
        %385 = vdwg.mxu0
        %386 = vmax.xlane.f32.xlu0 %v383
        %v387 = vpop.xlane.xlu0 %386
        %v388 = vsub.f32 %v383, %v387
        %v389 = vmul.f32 %v388, 1.442695
        %v390 = vpow.pop %v389
        %391 = vadd.xlane.f32.xlu0 %v390
        %v392 = vpop.xlane.xlu0 %391
        %v393 = vlog2.pop %v392
        %v394 = vmul.f32 %v393, 0.6931472
        %v395 = vadd.f32 %v387, %v394
        %396 = vset.pattern.permute.xlu0 2
        %397 = vperm.xlu0 %396, %v294
        %v398 = vpop.permute.xlu0 %397
        %vm399 = vcmp.eq.s32.totalorder %v293, %v398
        %v400 = vsel %vm399, %v383, 0.0
        %401 = vadd.xlane.f32.xlu0 %v400
        %v402 = vpop.xlane.xlu0 %401
        %vm403 = vcmp.ne.s32.totalorder %v294, 0
        %v404 = vsel %vm403, 1, 0
        %v405 = vcvt.s32.f32 %v404
        %v406 = vsub.f32 %v395, %v402
        %v407 = vmul.f32 %v406, %v405
        %409 = vrot.lane.b32.xlu0 %v407, 126
        %v410 = vpop.permute.xlu0 %409
        %vm412 = vcmask 7168
        %v413 = vsel %vm412, %v410, 0.0
        %414 = vadd.xlane.f32.xlu0 %v413
        %v415 = vpop.xlane.xlu0 %414
        %v416 = vrot.slane %v415, 4
        %v417 = vadd.f32 %v415, %v416
        %v418 = vrot.slane %v417, 2
        %v419 = vadd.f32 %v417, %v418
        %v420 = vrot.slane %v419, 1
        %v421 = vadd.f32 %v419, %v420
        %s422 = vtos %v421
        %424 = vrot.lane.b32.xlu0 %v405, 126
        %v425 = vpop.permute.xlu0 %424
        %v427 = vsel %vm412, %v425, 0.0
        %428 = vadd.xlane.f32.xlu0 %v427
        %v429 = vpop.xlane.xlu0 %428
        %v430 = vrot.slane %v429, 4
        %v431 = vadd.f32 %v429, %v430
        %v432 = vrot.slane %v431, 2
        %v433 = vadd.f32 %v431, %v432
        %v434 = vrot.slane %v433, 1
        %v435 = vadd.f32 %v433, %v434
        %s436 = vtos %v435
        %vm437 = vcmp.ge.f32.partialorder %v383, %v387
        %v438 = vsel %vm437, %v293, 128
        %v439 = vand.u32 %v438, 65535
        %v440 = vshra.s32 %v438, 16
        %v441 = vcvt.s32.f32 %v439
        %v442 = vcvt.s32.f32 %v440
        %443 = vmin.xlane.f32.xlu0 %v442
        %v444 = vpop.xlane.xlu0 %443
        %vm445 = vcmp.eq.f32.partialorder %v442, %v444
        %v446 = vsel %vm445, %v441, inf
        %447 = vmin.xlane.f32.xlu0 %v446
        %v448 = vpop.xlane.xlu0 %447
        %v449 = vcvt.f32.s32 %v448
        %v450 = vcvt.f32.s32 %v444
        %v451 = vshll.u32 %v450, 16
        %v452 = vadd.s32 %v451, %v449
        %v453 = vpack.c.bf16 %v390, %v390
        %v454 = vld [vmem:[#allocation5] sm:$0xf]
        %v455 = vld [vmem:[#allocation5 + $0x4] sm:$0xf]
        %v456 = vld [vmem:[#allocation5 + $0x8] sm:$0xf]
        %v457 = vld [vmem:[#allocation5 + $0xc] sm:$0xf]
        %v458 = vld [vmem:[#allocation5 + $0x10] sm:$0xf]
        %v459 = vld [vmem:[#allocation5 + $0x14] sm:$0xf]
        %v460 = vld [vmem:[#allocation5 + $0x18] sm:$0xf]
        %v461 = vld [vmem:[#allocation5 + $0x1c] sm:$0xf]
        %v462 = vld [vmem:[#allocation5 + $0x20] sm:$0xf]
        %v463 = vld [vmem:[#allocation5 + $0x24] sm:$0xf]
        %v464 = vld [vmem:[#allocation5 + $0x28] sm:$0xf]
        %v465 = vld [vmem:[#allocation5 + $0x2c] sm:$0xf]
        %v466 = vld [vmem:[#allocation5 + $0x30] sm:$0xf]
        %v467 = vld [vmem:[#allocation5 + $0x34] sm:$0xf]
        %v468 = vld [vmem:[#allocation5 + $0x38] sm:$0xf]
        %v469 = vld [vmem:[#allocation5 + $0x3c] sm:$0xf]
        %v486 = vunpack.c.l.b16 %v454
        %v487 = vunpack.c.l.b16 %v455
        %v488 = vunpack.c.l.b16 %v456
        %v489 = vunpack.c.l.b16 %v457
        %v490 = vunpack.c.l.b16 %v458
        %v491 = vunpack.c.l.b16 %v459
        %v492 = vunpack.c.l.b16 %v460
        %v493 = vunpack.c.l.b16 %v461
        %v494 = vunpack.c.l.b16 %v462
        %v495 = vunpack.c.l.b16 %v463
        %v496 = vunpack.c.l.b16 %v464
        %v497 = vunpack.c.l.b16 %v465
        %v498 = vunpack.c.l.b16 %v466
        %v499 = vunpack.c.l.b16 %v467
        %v500 = vunpack.c.l.b16 %v468
        %v501 = vunpack.c.l.b16 %v469
        %v502 = vpack.c.b16 %v487, %v486
        %v503 = vpack.c.b16 %v489, %v488
        %v504 = vpack.c.b16 %v491, %v490
        %v505 = vpack.c.b16 %v493, %v492
        %v506 = vpack.c.b16 %v495, %v494
        %v507 = vpack.c.b16 %v497, %v496
        %v508 = vpack.c.b16 %v499, %v498
        %v509 = vpack.c.b16 %v501, %v500
        %518 = vmatpush.bf16.msra.mxu0 %v509
        %519 = vmatpush.bf16.msra.mxu0 %v508
        %520 = vmatpush.bf16.msra.mxu0 %v507
        %521 = vmatpush.bf16.msra.mxu0 %v506
        %522 = vmatpush.bf16.msra.mxu0 %v505
        %523 = vmatpush.bf16.msra.mxu0 %v504
        %524 = vmatpush.bf16.msra.mxu0 %v503
        %525 = vmatpush.bf16.msra.mxu0 %v502
        %526 = vmatmul.bf16.gmra.mxu0 %v453
        %v527 = vpop.f32.mrf.mxu0
        %v528 = vadd.f32 0.0, %v527
        %v529 = vpop.f32.mrf.mxu0
        %530 = vdwg.mxu0
        %532 = vrot.lane.b32.xlu0 %v528, 6
        %v533 = vpop.permute.xlu0 %532
        %v535 = vmul.f32 %v297, %v533
        %537 = vset.pattern.permute.xlu0 5
        %538 = vperm.xlu0 %537, %v535
        %v539 = vpop.permute.xlu0 %538
        %vm541 = vcmp.ge.f32.partialorder %v528, %v539
        %v542 = vsel %vm541, %v293, 128
        %v543 = vand.u32 %v542, 65535
        %v544 = vshra.s32 %v542, 16
        %v545 = vcvt.s32.f32 %v543
        %v546 = vcvt.s32.f32 %v544
        %547 = vmin.xlane.f32.xlu0 %v546
        %v548 = vpop.xlane.xlu0 %547
        %vm549 = vcmp.eq.f32.partialorder %v546, %v548
        %v550 = vsel %vm549, %v545, inf
        %551 = vmin.xlane.f32.xlu0 %v550
        %v552 = vpop.xlane.xlu0 %551
        %v553 = vcvt.f32.s32 %v552
        %v554 = vcvt.f32.s32 %v548
        %v555 = vshll.u32 %v554, 16
        %v556 = vadd.s32 %v555, %v553
        %vm557 = vcmp.lt.s32.totalorder %v556, 31
        %v558 = vsel %vm557, %v556, 31
        %559 = vrot.lane.b32.xlu0 %v294, 2
        %v560 = vpop.permute.xlu0 %559
        %v561 = vsel %vm403, %v558, %v560
        %562 = vset.pattern.permute.xlu0 3
        %563 = vperm.xlu0 %562, %v561
        %v564 = vpop.permute.xlu0 %563
        %vm565 = vcmp.eq.s32.totalorder %v293, %v564
        %v566 = vld [vmem:[%s4] sm:$0x1]
        %v568 = vperm.slane %v566, 0
        %v570 = vsel %vm565, %v568, 0.0
        %571 = vadd.xlane.f32.xlu0 %v570
        %v572 = vpop.xlane.xlu0 %571
        %573 = vrot.lane.b32.xlu0 %v561, 126
        %v574 = vpop.permute.xlu0 %573
        %vm575 = vcmp.ne.s32.totalorder %v294, %v574
        %v576 = vsel %vm575, 1, 0
        %v577 = vcvt.s32.f32 %v576
        %v578 = vmax.f32 %v572, 0.0
        %v579 = vmul.f32 %v572, %v577
        %v580 = vsub.f32 %v578, %v579
        %v581 = vand.u32 2147483647, %v572
        %v582 = vsub.f32 0.0, %v581
        %v583 = vmul.f32 %v582, 1.442695
        %v584 = vpow.pop %v583
        %v585 = vadd.f32 %v584, 1.0
        %v586 = vlog2.pop %v585
        %v587 = vmul.f32 %v586, 0.6931472
        %v588 = vadd.f32 %v580, %v587
        %v589 = vmul.f32 %v588, %v405
        %591 = vrot.lane.b32.xlu0 %v589, 127
        %v592 = vpop.permute.xlu0 %591
        %v594 = vsel %vm412, %v592, 0.0
        %595 = vadd.xlane.f32.xlu0 %v594
        %v596 = vpop.xlane.xlu0 %595
        %v597 = vrot.slane %v596, 4
        %v598 = vadd.f32 %v596, %v597
        %v599 = vrot.slane %v598, 2
        %v600 = vadd.f32 %v598, %v599
        %v601 = vrot.slane %v600, 1
        %v602 = vadd.f32 %v600, %v601
        %s603 = vtos %v602
        %604 = vrot.lane.b32.xlu0 %v405, 127
        %v605 = vpop.permute.xlu0 %604
        %v607 = vsel %vm412, %v605, 0.0
        %608 = vadd.xlane.f32.xlu0 %v607
        %v609 = vpop.xlane.xlu0 %608
        %v610 = vrot.slane %v609, 4
        %v611 = vadd.f32 %v609, %v610
        %v612 = vrot.slane %v611, 2
        %v613 = vadd.f32 %v611, %v612
        %v614 = vrot.slane %v613, 1
        %v615 = vadd.f32 %v613, %v614
        %s616 = vtos %v615
        %vm617 = vcmp.gt.f32.partialorder %v572, 0.0
        %v618 = vsel %vm617, 1, 0
        %v619 = vcvt.s32.f32 %v618
        %vm620 = vcmp.eq.s32.totalorder %v294, 0
        %621 = vrot.lane.b32.xlu0 %v404, 127
        %v622 = vpop.permute.xlu0 %621
        %vm623 = vcmp.ne.s32.totalorder %v622, 0
        %vm624 = vmand %vm620, %vm623
        %v625 = vsel %vm624, 1, 0
        %v626 = vcvt.s32.f32 %v625
        %627 = vrot.lane.b32.xlu0 %v405, 125
        %v628 = vpop.permute.xlu0 %627
        %v630 = vsel %vm412, %v628, 0.0
        %631 = vadd.xlane.f32.xlu0 %v630
        %v632 = vpop.xlane.xlu0 %631
        %v633 = vrot.slane %v632, 4
        %v634 = vadd.f32 %v632, %v633
        %v635 = vrot.slane %v634, 2
        %v636 = vadd.f32 %v634, %v635
        %v637 = vrot.slane %v636, 1
        %v638 = vadd.f32 %v636, %v637
        %s639 = vtos %v638
        %641 = vrot.lane.b32.xlu0 %v626, 125
        %v642 = vpop.permute.xlu0 %641
        %v644 = vsel %vm412, %v642, 0.0
        %645 = vadd.xlane.f32.xlu0 %v644
        %v646 = vpop.xlane.xlu0 %645
        %v647 = vrot.slane %v646, 4
        %v648 = vadd.f32 %v646, %v647
        %v649 = vrot.slane %v648, 2
        %v650 = vadd.f32 %v648, %v649
        %v651 = vrot.slane %v650, 1
        %v652 = vadd.f32 %v650, %v651
        %s653 = vtos %v652
        %vm654 = vcmp.eq.s32.totalorder %v294, %v452
        %v655 = vsel %vm654, 1, 0
        %v656 = vcvt.s32.f32 %v655
        %v657 = vmul.f32 %v656, %v605
        %659 = vrot.lane.b32.xlu0 %v657, 126
        %v660 = vpop.permute.xlu0 %659
        %v662 = vsel %vm412, %v660, 0.0
        %663 = vadd.xlane.f32.xlu0 %v662
        %v664 = vpop.xlane.xlu0 %663
        %v665 = vrot.slane %v664, 4
        %v666 = vadd.f32 %v664, %v665
        %v667 = vrot.slane %v666, 2
        %v668 = vadd.f32 %v666, %v667
        %v669 = vrot.slane %v668, 1
        %v670 = vadd.f32 %v668, %v669
        %s671 = vtos %v670
        %vm672 = vcmp.eq.f32.partialorder %v577, %v619
        %v673 = vsel %vm672, 1, 0
        %v674 = vcvt.s32.f32 %v673
        %v675 = vmul.f32 %v674, %v425
        %677 = vrot.lane.b32.xlu0 %v675, 127
        %v678 = vpop.permute.xlu0 %677
        %v680 = vsel %vm412, %v678, 0.0
        %681 = vadd.xlane.f32.xlu0 %v680
        %v682 = vpop.xlane.xlu0 %681
        %v683 = vrot.slane %v682, 4
        %v684 = vadd.f32 %v682, %v683
        %v685 = vrot.slane %v684, 2
        %v686 = vadd.f32 %v684, %v685
        %v687 = vrot.slane %v686, 1
        %v688 = vadd.f32 %v686, %v687
        %s689 = vtos %v688
        %690 = vrot.lane.b32.xlu0 %v626, 126
        %v691 = vpop.permute.xlu0 %690
        %v693 = vmul.f32 %v674, %v691
        %695 = vrot.lane.b32.xlu0 %v693, 127
        %v696 = vpop.permute.xlu0 %695
        %v698 = vsel %vm412, %v696, 0.0
        %699 = vadd.xlane.f32.xlu0 %v698
        %v700 = vpop.xlane.xlu0 %699
        %v701 = vrot.slane %v700, 4
        %v702 = vadd.f32 %v700, %v701
        %v703 = vrot.slane %v702, 2
        %v704 = vadd.f32 %v702, %v703
        %v705 = vrot.slane %v704, 1
        %v706 = vadd.f32 %v704, %v705
        %s707 = vtos %v706
        %v708 = vlaneseq
        %v709 = vshrl.u32 %v708, 7
        %vm710 = vcmp.eq.s32.totalorder %v709, %v293
        %712 = vset.pattern.permute.xlu0 1
        %713 = vperm.xlu0 %712, %v577
        %v714 = vpop.permute.xlu0 %713
        %v716 = vsel %vm710, %v714, 0.0
        %vm717 = vcmask 64512
        %v718 = vsel %vm717, %v716, 0.0
        %v719 = vrot.slane %v718, 4
        %v720 = vadd.f32 %v718, %v719
        %v721 = vrot.slane %v720, 2
        %v722 = vadd.f32 %v720, %v721
        %v723 = vrot.slane %v722, 1
        %v724 = vadd.f32 %v722, %v723
        %v725 = vsel %vm710, %v619, 0.0
        %v726 = vsel %vm717, %v725, 0.0
        %v727 = vrot.slane %v726, 4
        %v728 = vadd.f32 %v726, %v727
        %v729 = vrot.slane %v728, 2
        %v730 = vadd.f32 %v728, %v729
        %v731 = vrot.slane %v730, 1
        %v732 = vadd.f32 %v730, %v731
        %vm733 = vcmp.eq.s32.totalorder %v709, 0
        %v734 = vsel %vm733, %v724, 0.0
        %vm735 = vcmp.eq.s32.totalorder %v709, 1
        %v736 = vsel %vm735, %v732, 0.0
        %v737 = vadd.f32 %v734, %v736
        %738 = vst.msk [vmem:[%s287] sm:$0xff] %vm717, %v737
        %vm739 = vcmp.eq.s32.totalorder %v293, 0
        %v740 = vsel %vm739, 1, 0
        %v741 = vcvt.s32.f32 %v740
        %v742 = vstv %s422
        %v743 = vmul.f32 %v741, %v742
        %vm744 = vcmp.eq.s32.totalorder %v293, 1
        %v745 = vsel %vm744, 1, 0
        %v746 = vcvt.s32.f32 %v745
        %v747 = vstv %s436
        %v748 = vmul.f32 %v746, %v747
        %v749 = vadd.f32 %v743, %v748
        %vm750 = vcmp.eq.s32.totalorder %v293, 2
        %v751 = vsel %vm750, 1, 0
        %v752 = vcvt.s32.f32 %v751
        %v753 = vstv %s603
        %v754 = vmul.f32 %v752, %v753
        %v755 = vadd.f32 %v749, %v754
        %vm756 = vcmp.eq.s32.totalorder %v293, 3
        %v757 = vsel %vm756, 1, 0
        %v758 = vcvt.s32.f32 %v757
        %v759 = vstv %s616
        %v760 = vmul.f32 %v758, %v759
        %v761 = vadd.f32 %v755, %v760
        %vm762 = vcmp.eq.s32.totalorder %v293, 4
        %v763 = vsel %vm762, 1, 0
        %v764 = vcvt.s32.f32 %v763
        %v765 = vstv %s671
        %v766 = vmul.f32 %v764, %v765
        %v767 = vadd.f32 %v761, %v766
        %vm768 = vcmp.eq.s32.totalorder %v293, 5
        %v769 = vsel %vm768, 1, 0
        %v770 = vcvt.s32.f32 %v769
        %v771 = vstv %s639
        %v772 = vmul.f32 %v770, %v771
        %v773 = vadd.f32 %v767, %v772
        %vm774 = vcmp.eq.s32.totalorder %v293, 6
        %v775 = vsel %vm774, 1, 0
        %v776 = vcvt.s32.f32 %v775
        %v777 = vstv %s689
        %v778 = vmul.f32 %v776, %v777
        %v779 = vadd.f32 %v773, %v778
        %vm780 = vcmp.eq.s32.totalorder %v293, 7
        %v781 = vsel %vm780, 1, 0
        %v782 = vcvt.s32.f32 %v781
        %v783 = vstv %s707
        %v784 = vmul.f32 %v782, %v783
        %v785 = vadd.f32 %v779, %v784
        %vm786 = vcmp.eq.s32.totalorder %v293, 8
        %v787 = vsel %vm786, 1, 0
        %v788 = vcvt.s32.f32 %v787
        %v789 = vstv %s653
        %v790 = vmul.f32 %v788, %v789
        %v791 = vadd.f32 %v785, %v790
        %v792 = vadd.f32 %v791, 0.0
        %793 = vst [vmem:[%s280] sm:$0xff] %v792
        %s794 = sand.u32 %s144, 1
        %s795 = scalar_lea.sflag [#allocation4], %s794
        %s796 = sand.u32 %s144, 1
        %s797 = smul.addr %s796, 8
        %s798 = scalar_lea.vmem [#allocation7], %s797
        %s799 = sand.u32 %s170, 1
        %s800 = scalar_lea.sflag [#allocation9], %s799
        %s801 = sand.u32 %s170, 1
        %s802 = smul.addr %s801, 8
        %s803 = scalar_lea.vmem [#allocation8], %s802
        // Predicated region
        $region49: #{tpu_custom_call.1} parent=39 // pred_check
          %p804 = pneg %p154
        $region50: #{tpu_custom_call.1} parent=39 // pred_check_branch
          %806 = sbr.rel (%p804) target = $region52
        $region51: #{tpu_custom_call.1} parent=39 // pred_region
          %808 = vsyncadd %s795, 0
          %s809 = smul.addr %s26, 8
          %s810 = scalar_lea.hbm %s5, %s809
          %s812 = sshll.u32 %s798, 4
          %s813 = int_to_ptr.vmem [resolvable:$true] %s812
          %s814 = sshll.u32 %s810, 4
          %s815 = int_to_ptr.hbm [resolvable:$true] %s814
          %817 = dma.vmem_to_hbm [thread:$0]  %s813, 128, %s815, %s795
        $region52: #{tpu_custom_call.1} parent=39 // pred_fallthru
          _
        // Predicated region
        $region53: #{tpu_custom_call.1} parent=39 // pred_check
          %p818 = pneg %p180
        $region54: #{tpu_custom_call.1} parent=39 // pred_check_branch
          %820 = sbr.rel (%p818) target = $region56
        $region55: #{tpu_custom_call.1} parent=39 // pred_region
          %822 = vsyncadd %s800, 0
          %s823 = smul.addr %s26, 8
          %s824 = scalar_lea.hbm %s6, %s823
          %s826 = sshll.u32 %s803, 4
          %s827 = int_to_ptr.vmem [resolvable:$true] %s826
          %s828 = sshll.u32 %s824, 4
          %s829 = int_to_ptr.hbm [resolvable:$true] %s828
          %831 = dma.vmem_to_hbm [thread:$0]  %s827, 128, %s829, %s800
        $region56: #{tpu_custom_call.1} parent=39 // pred_fallthru
          _
      $region40: #{tpu_custom_call.1} parent=5 // pred_fallthru
        _
      %p832 = scmp.le.s32.totalorder 2, %s21
      // Predicated region
      $region57: #{tpu_custom_call.1} parent=5 // pred_check
        %p833 = pneg %p832
      $region58: #{tpu_custom_call.1} parent=5 // pred_check_branch
        %835 = sbr.rel (%p833) target = $region60
      $region59: #{tpu_custom_call.1} parent=5 // pred_region
        %s836 = ssub.s32 %s21, 2
        // Predicated region
        $region61: #{tpu_custom_call.1} parent=59 // pred_check
          %p837 = pneg %p160
        $region62: #{tpu_custom_call.1} parent=59 // pred_check_branch
          %839 = sbr.rel (%p837) target = $region64
        $region63: #{tpu_custom_call.1} parent=59 // pred_region
          %s840 = sand.u32 %s145, 1
          %s841 = scalar_lea.sflag [#allocation4], %s840
          %s842 = sand.u32 %s145, 1
          %s843 = smul.addr %s842, 8
          %s844 = scalar_lea.vmem [#allocation7], %s843
          %846 = dma.done %s841, 128
        $region64: #{tpu_custom_call.1} parent=59 // pred_fallthru
          _
        // Predicated region
        $region65: #{tpu_custom_call.1} parent=59 // pred_check
          %p847 = pneg %p186
        $region66: #{tpu_custom_call.1} parent=59 // pred_check_branch
          %849 = sbr.rel (%p847) target = $region68
        $region67: #{tpu_custom_call.1} parent=59 // pred_region
          %s850 = sand.u32 %s171, 1
          %s851 = scalar_lea.sflag [#allocation9], %s850
          %s852 = sand.u32 %s171, 1
          %s853 = smul.addr %s852, 8
          %s854 = scalar_lea.vmem [#allocation8], %s853
          %856 = dma.done %s851, 128
        $region68: #{tpu_custom_call.1} parent=59 // pred_fallthru
          _
      $region60: #{tpu_custom_call.1} parent=5 // pred_fallthru
        _
    $region6: #{tpu_custom_call.1} parent=1 // loop_footer
      %s25 = sadd.s32 1, %s21
    $region7: #{tpu_custom_call.1} parent=1 // loop_footer_branch
      %20 = sbr.rel target = $region3
    $region8: #{tpu_custom_call.1} parent=1 // loop_exit
      _
    %857 = vsyncpa [#allocation3], 1
    %s858 = scalar_lea.sflag [#allocation3], 1
    %859 = vsyncpa %s858, 1
    %860 = vsyncpa [#allocation6], 1
    %861 = vsyncpa [#allocation4], 1
    %s862 = scalar_lea.sflag [#allocation4], 1
    %863 = vsyncpa %s862, 1
    %864 = vsyncpa [#allocation9], 1
    %s865 = scalar_lea.sflag [#allocation9], 1
    %866 = vsyncpa %s865, 1

</llo_original>
